<compile_context>
chip_gen: v5e
topology: v5e:2x2
jax: 0.10.0
libtpu: 0.0.40
codegen_flags: <defaults>
</compile_context>

<pallas_src>
import functools
import math

import jax
import jax.numpy as jnp
import numpy as np
from jax import lax
from jax.experimental import pallas as pl
from jax.experimental.pallas import tpu as pltpu


def _round_up(x, m):
    return ((x + m - 1) // m) * m


# --------------------------------------------------------------------------
# fused K/Q/V projection kernel:  y = x @ W_fused + b_fused   (W pre-transposed)
# --------------------------------------------------------------------------

def _linear_kernel(x_ref, wt_ref, b_ref, o_ref):
    o_ref[...] = (
        jnp.dot(x_ref[...], wt_ref[...], preferred_element_type=jnp.float32)
        + b_ref[...]
    )


def linear_pallas(x, wt, b, tile_n=256):
    n, din = x.shape
    dout = wt.shape[1]
    tile_n = min(tile_n, _round_up(n, 8))
    grid = (pl.cdiv(n, tile_n),)
    return pl.pallas_call(
        _linear_kernel,
        out_shape=jax.ShapeDtypeStruct((n, dout), jnp.float32),
        grid=grid,
        in_specs=[
            pl.BlockSpec((tile_n, din), lambda i: (i, 0)),
            pl.BlockSpec((din, dout), lambda i: (0, 0)),
            pl.BlockSpec((1, dout), lambda i: (0, 0)),
        ],
        out_specs=pl.BlockSpec((tile_n, dout), lambda i: (i, 0)),
        compiler_params=pltpu.CompilerParams(dimension_semantics=("parallel",)),
    )(x, wt, b.reshape(1, dout))


# --------------------------------------------------------------------------
# per-relation edge attention + aggregation kernel (head-packed, lane-dense)
# --------------------------------------------------------------------------

def _hgt_edge_kernel(q_ref, kqv_ref, att_ref, msg_ref, mew_ref, o_ref, *,
                     heads, d_k):
    hd = heads * d_k
    q = q_ref[...]                       # (Td, HD)   compute dtype (bf16)
    kqv = kqv_ref[...]                   # (Ns, 3*HD) packed [k | q | v]
    k = kqv[:, :hd]
    v = kqv[:, 2 * hd:]

    # relation transforms: single lane-dense matmuls (pri/sqrt_dk pre-folded
    # into att_ref's block-diagonal).
    k2 = jnp.dot(k, att_ref[...], preferred_element_type=jnp.float32)
    v2 = jnp.dot(v, msg_ref[...], preferred_element_type=jnp.float32)
    k2 = k2.astype(q.dtype)
    v2 = v2.astype(q.dtype)

    mew = mew_ref[...].astype(jnp.float32)       # masked edge weights (Td, Ns)
    emask = mew > 0.0                            # edge mask reconstructed

    col = lax.broadcasted_iota(jnp.int32, (1, hd), 1)
    zero = jnp.zeros((), q.dtype)
    acc = jnp.zeros(o_ref.shape, jnp.float32)

    # Unrolled per-head loop.  Zeroing the other heads' 24 of 32 columns costs
    # no extra vmatmul pushes (HD=32 << one MXU tile) but keeps every operand /
    # result lane-dense and the output store unmasked.
    for hh in range(heads):
        head_cols = (col >= hh * d_k) & (col < (hh + 1) * d_k)   # (1, HD)
        k2h = jnp.where(head_cols, k2, zero)
        # scores_h[d, s] = sum_c q[d, c] * k2h[s, c]   (only head hh survives)
        s = lax.dot_general(q, k2h, (((1,), (1,)), ((), ())),
                            preferred_element_type=jnp.float32)   # (Td, Ns)
        s = s * mew                                               # edge weights
        sm = jnp.where(emask, s, jnp.float32(-1e30))
        m = jnp.max(sm, axis=-1, keepdims=True)
        e = jnp.where(emask, jnp.exp(sm - m), jnp.float32(0.0))
        den = jnp.sum(e, axis=-1, keepdims=True)
        inv = pl.reciprocal(jnp.where(den > 0.0, den, jnp.float32(1.0)),
                            approx=True)
        attn = (e * inv).astype(q.dtype)                          # 0 in-deg -> 0
        v2h = jnp.where(head_cols, v2, zero)
        acc = acc + jnp.dot(attn, v2h, preferred_element_type=jnp.float32)

    o_ref[...] = acc                      # (Td, HD) lane-dense f32 output


def hgt_edge_pallas(q_dst, kqv_src, att_bd, msg_bd, masked_ew, heads, d_k,
                    tile_d=128, compute_dtype=jnp.bfloat16):
    nd = q_dst.shape[0]
    ns = kqv_src.shape[0]
    hd = heads * d_k
    tile_d = min(tile_d, _round_up(nd, 8))     # per-generation knob (v7x: keep small)
    grid = (pl.cdiv(nd, tile_d),)
    kern = functools.partial(_hgt_edge_kernel, heads=heads, d_k=d_k)
    return pl.pallas_call(
        kern,
        out_shape=jax.ShapeDtypeStruct((nd, hd), jnp.float32),
        grid=grid,
        in_specs=[
            pl.BlockSpec((tile_d, hd), lambda i: (i, 0)),     # q[dst] tile
            pl.BlockSpec((ns, 3 * hd), lambda i: (0, 0)),     # kqv[src] (resident)
            pl.BlockSpec((hd, hd), lambda i: (0, 0)),         # rel_att block-diag
            pl.BlockSpec((hd, hd), lambda i: (0, 0)),         # rel_msg block-diag
            pl.BlockSpec((tile_d, ns), lambda i: (i, 0)),     # masked edge weights
        ],
        out_specs=pl.BlockSpec((tile_d, hd), lambda i: (i, 0)),
        compiler_params=pltpu.CompilerParams(dimension_semantics=("parallel",)),
    )(q_dst.astype(compute_dtype), kqv_src.astype(compute_dtype),
      att_bd.astype(compute_dtype), msg_bd.astype(compute_dtype),
      masked_ew.astype(compute_dtype))


# --------------------------------------------------------------------------
# output head:  out = (t_sum @ Wa'/n_rel + b) * alpha + h * (1 - alpha)
# --------------------------------------------------------------------------

def _output_kernel(t_ref, h_ref, wat_ref, ba_ref, alpha_ref, o_ref):
    a = alpha_ref[0]                              # SMEM scalar
    trans = (jnp.dot(t_ref[...], wat_ref[...],
                     preferred_element_type=jnp.float32) + ba_ref[...])
    # TODO(synk): dropout on `trans` is identity at inference time.
    o_ref[...] = trans * a + h_ref[...] * (1.0 - a)


def output_pallas(t_sum, x, wa_t, ba, alpha, tile_n=256):
    n, dout = t_sum.shape
    tile_n = min(tile_n, _round_up(n, 8))
    grid = (pl.cdiv(n, tile_n),)
    return pl.pallas_call(
        _output_kernel,
        out_shape=jax.ShapeDtypeStruct((n, dout), jnp.float32),
        grid=grid,
        in_specs=[
            pl.BlockSpec((tile_n, dout), lambda i: (i, 0)),
            pl.BlockSpec((tile_n, dout), lambda i: (i, 0)),
            pl.BlockSpec((dout, dout), lambda i: (0, 0)),
            pl.BlockSpec((1, dout), lambda i: (0, 0)),
            pl.BlockSpec(memory_space=pltpu.MemorySpace.SMEM),   # alpha scalar
        ],
        out_specs=pl.BlockSpec((tile_n, dout), lambda i: (i, 0)),
        compiler_params=pltpu.CompilerParams(dimension_semantics=("parallel",)),
    )(t_sum, x, wa_t, ba.reshape(1, dout), alpha)


# --------------------------------------------------------------------------
# HGT layer forward (glue around the Pallas kernels)
# --------------------------------------------------------------------------

def _block_diag_heads(rel, head_scale=None):
    """(H, dk, dk) -> (H*dk, H*dk) block diagonal, optionally scaled per head."""
    h, dk, _ = rel.shape
    if head_scale is not None:
        rel = rel * head_scale[:, None, None]
    eye = jnp.eye(h, dtype=rel.dtype)
    return jnp.einsum('hij,hg->higj', rel, eye).reshape(h * dk, h * dk)


def hgt_layer_forward(params, h, graph, heads, d_k, out_dim,
                      compute_dtype=jnp.bfloat16, tile_d=128):
    hd = heads * d_k
    assert hd == out_dim

    # fused K/Q/V projection per node type -> (N, 3*out_dim), layout [k | q | v]
    kqv, q_packed = {}, {}
    for t, x in h.items():
        w_fused = jnp.concatenate(
            [params['Wk'][t].T, params['Wq'][t].T, params['Wv'][t].T], axis=1)
        b_fused = jnp.concatenate(
            [params['bk'][t], params['bq'][t], params['bv'][t]], axis=0)
        kqv[t] = linear_pallas(x, w_fused, b_fused)
        q_packed[t] = kqv[t][:, hd:2 * hd]

    # per canonical edge type: attention + aggregation (lane-dense output)
    inv_sqrt_dk = 1.0 / math.sqrt(d_k)
    per_dst = {t: [] for t in h}
    for (src_t, e_id, dst_t), mew in graph.items():
        att_bd = _block_diag_heads(params['rel_att'][e_id],
                                   params['rel_pri'][e_id] * inv_sqrt_dk)
        msg_bd = _block_diag_heads(params['rel_msg'][e_id])
        t_rel = hgt_edge_pallas(q_packed[dst_t], kqv[src_t], att_bd, msg_bd,
                                mew, heads, d_k, tile_d=tile_d,
                                compute_dtype=compute_dtype)
        per_dst[dst_t].append(t_rel)

    # cross_reducer='mean' (folded into Wa) + skip-connected output head
    new_h = {}
    for t, x in h.items():
        rels = per_dst[t]
        t_sum = rels[0]
        for r in rels[1:]:
            t_sum = t_sum + r
        wa_t = params['Wa'][t].T * (1.0 / len(rels))     # exact mean folding
        alpha = jax.nn.sigmoid(params['skip'][t]).reshape(1).astype(jnp.float32)
        new_h[t] = output_pallas(t_sum, x, wa_t, params['ba'][t], alpha)
    return new_h


# --------------------------------------------------------------------------
# plain-JAX reference (f32) for a correctness check
# --------------------------------------------------------------------------

def ref_forward(params, h, graph, heads, d_k, out_dim):
    sqrt_dk = math.sqrt(d_k)
    k_all, q_all, v_all = {}, {}, {}
    for t, x in h.items():
        n = x.shape[0]
        k_all[t] = (x @ params['Wk'][t].T + params['bk'][t]).reshape(n, heads, d_k)
        q_all[t] = (x @ params['Wq'][t].T + params['bq'][t]).reshape(n, heads, d_k)
        v_all[t] = (x @ params['Wv'][t].T + params['bv'][t]).reshape(n, heads, d_k)
    per_dst = {t: [] for t in h}
    for (s, e, d), mew in graph.items():
        mask = mew > 0
        k2 = jnp.einsum('shk,hkj->shj', k_all[s], params['rel_att'][e])
        v2 = jnp.einsum('shk,hkj->shj', v_all[s], params['rel_msg'][e])
        scores = jnp.einsum('dhj,shj->dsh', q_all[d], k2)
        scores = scores * params['rel_pri'][e][None, None, :] / sqrt_dk
        scores = scores * mew[:, :, None]
        m3 = mask[:, :, None]
        masked = jnp.where(m3, scores, -1e30)
        mx = jnp.max(masked, axis=1, keepdims=True)
        ee = jnp.where(m3, jnp.exp(masked - mx), 0.0)
        ss = jnp.sum(ee, axis=1, keepdims=True)
        attn = ee / jnp.where(ss > 0, ss, 1.0)
        per_dst[d].append(jnp.einsum('dsh,shj->dhj', attn, v2))
    new_h = {}
    for t, x in h.items():
        agg = jnp.mean(jnp.stack(per_dst[t], 0), 0).reshape(x.shape[0], out_dim)
        alpha = jax.nn.sigmoid(params['skip'][t])
        trans = agg @ params['Wa'][t].T + params['ba'][t]
        new_h[t] = trans * alpha + x * (1.0 - alpha)
    return new_h


# --------------------------------------------------------------------------
# deterministic parameter init (shapes match HGTLayer.__init__)
# --------------------------------------------------------------------------

def init_params(key, num_types, num_relations, in_dim, out_dim, heads):
    d_k = out_dim // heads
    keys = jax.random.split(key, 4)

    def lin(k, fan_in, fan_out):
        bound = 1.0 / math.sqrt(fan_in)
        k1, k2 = jax.random.split(k)
        w = jax.random.uniform(k1, (fan_out, fan_in), jnp.float32, -bound, bound)
        b = jax.random.uniform(k2, (fan_out,), jnp.float32, -bound, bound)
        return w, b

    Wk, bk, Wq, bq, Wv, bv, Wa, ba = [], [], [], [], [], [], [], []
    tk = jax.random.split(keys[0], num_types * 4)
    for t in range(num_types):
        w, b = lin(tk[4 * t + 0], in_dim, out_dim); Wk.append(w); bk.append(b)
        w, b = lin(tk[4 * t + 1], in_dim, out_dim); Wq.append(w); bq.append(b)
        w, b = lin(tk[4 * t + 2], in_dim, out_dim); Wv.append(w); bv.append(b)
        w, b = lin(tk[4 * t + 3], out_dim, out_dim); Wa.append(w); ba.append(b)

    xav = math.sqrt(6.0 / (d_k + d_k))   # xavier_uniform_
    rel_att = jax.random.uniform(keys[1], (num_relations, heads, d_k, d_k),
                                 jnp.float32, -xav, xav)
    rel_msg = jax.random.uniform(keys[2], (num_relations, heads, d_k, d_k),
                                 jnp.float32, -xav, xav)
    rel_pri = jnp.ones((num_relations, heads), jnp.float32)
    skip = jnp.ones((num_types,), jnp.float32)
    return dict(Wk=Wk, bk=bk, Wq=Wq, bq=bq, Wv=Wv, bv=bv, Wa=Wa, ba=ba,
                rel_att=rel_att, rel_msg=rel_msg, rel_pri=rel_pri, skip=skip)


# --------------------------------------------------------------------------

if __name__ == "__main__":
    in_dim = out_dim = 32           # residual blend requires in_dim == out_dim
    heads = 4
    d_k = out_dim // heads
    num_types = 2
    num_relations = 3
    n_nodes = {0: 16, 1: 8}

    key = jax.random.PRNGKey(0)
    k_param, k_h, k_g = jax.random.split(key, 3)
    params = init_params(k_param, num_types, num_relations, in_dim, out_dim, heads)

    hk = jax.random.split(k_h, num_types)
    h = {t: jax.random.normal(hk[t], (n_nodes[t], in_dim), jnp.float32)
         for t in range(num_types)}

    # canonical etypes: (src_type_id, edge_id, dst_type_id); dense adjacency is
    # stored as one merged masked-edge-weight array (0 where no edge).
    canon = [(1, 0, 0), (0, 1, 1), (0, 2, 0)]
    gk = jax.random.split(k_g, 2 * len(canon))
    graph = {}
    for i, (s, e, d) in enumerate(canon):
        mask = (jax.random.uniform(gk[2 * i], (n_nodes[d], n_nodes[s])) < 0.6
                ).astype(jnp.float32)
        ew = jax.random.uniform(gk[2 * i + 1], (n_nodes[d], n_nodes[s]),
                                jnp.float32, 0.5, 1.5)
        graph[(s, e, d)] = jnp.where(mask > 0.5, ew, 0.0)

    out = hgt_layer_forward(params, h, graph, heads, d_k, out_dim,
                            compute_dtype=jnp.bfloat16, tile_d=128)
    out = {t: jax.block_until_ready(v) for t, v in out.items()}

    ref = ref_forward(params, h, graph, heads, d_k, out_dim)
    for t in out:
        # loose tolerance: kernel uses bf16 MXU inputs + approx reciprocal
        np.testing.assert_allclose(np.asarray(out[t]), np.asarray(ref[t]),
                                   rtol=5e-2, atol=5e-2)
    print("KERNEL_OK")
</pallas_src>

<mosaic_0001>
module attributes {stable_mosaic.version = 11 : i64} {
  func.func @_linear_kernel(%arg0: i32, %arg1: memref<16x32xf32, #tpu.memory_space<vmem>>, %arg2: memref<32x96xf32, #tpu.memory_space<vmem>>, %arg3: memref<1x96xf32, #tpu.memory_space<vmem>>, %arg4: memref<16x96xf32, #tpu.memory_space<vmem>>) attributes {dimension_semantics = [#tpu.dimension_semantics<parallel>], iteration_bounds = array<i64: 1>, scalar_prefetch = 0 : i64, scratch_operands = 0 : i64, tpu.core_type = #tpu.core_type<tc>, window_params = [{transform_indices = @transform_0, window_bounds = array<i64: 16, 32>}, {pipeline_mode = #tpu.pipeline_mode<synchronous>, transform_indices = @transform_1, window_bounds = array<i64: 32, 96>}, {pipeline_mode = #tpu.pipeline_mode<synchronous>, transform_indices = @transform_2, window_bounds = array<i64: 1, 96>}, {transform_indices = @transform_3, window_bounds = array<i64: 16, 96>}]} {
    %c0 = arith.constant 0 : index
    %c0_0 = arith.constant 0 : index
    %0 = vector.load %arg1[%c0, %c0_0] : memref<16x32xf32, #tpu.memory_space<vmem>>, vector<16x32xf32>
    %c0_1 = arith.constant 0 : index
    %c0_2 = arith.constant 0 : index
    %1 = vector.load %arg2[%c0_1, %c0_2] : memref<32x96xf32, #tpu.memory_space<vmem>>, vector<32x96xf32>
    %cst = arith.constant dense<0.000000e+00> : vector<16x96xf32>
    %2 = tpu.matmul %0, %1, %cst {dimension_numbers = #tpu.dot_dimension_numbers<[1], [0], [0], [1], [0, 0, 1, 1], [], []>} : vector<16x32xf32>, vector<32x96xf32>, vector<16x96xf32> -> vector<16x96xf32>
    %c0_3 = arith.constant 0 : index
    %c0_4 = arith.constant 0 : index
    %3 = vector.load %arg3[%c0_3, %c0_4] : memref<1x96xf32, #tpu.memory_space<vmem>>, vector<1x96xf32>
    %4 = vector.broadcast %3 : vector<1x96xf32> to vector<16x96xf32>
    %5 = arith.addf %2, %4 : vector<16x96xf32>
    %c0_5 = arith.constant 0 : index
    %c0_6 = arith.constant 0 : index
    %6 = vector.load %arg4[%c0_5, %c0_6] : memref<16x96xf32, #tpu.memory_space<vmem>>, vector<16x96xf32>
    tpu.vector_store %arg4[%c0_5, %c0_6], %5 {strides = array<i32>} : memref<16x96xf32, #tpu.memory_space<vmem>>, vector<16x96xf32>,
    return
  }
  func.func @transform_0(%arg0: i32) -> (i32, i32) {
    %c0_i32 = arith.constant 0 : i32
    %c0_i32_0 = arith.constant 0 : i32
    return %arg0, %c0_i32 : i32, i32
  }
  func.func @transform_1(%arg0: i32) -> (i32, i32) {
    %c0_i32 = arith.constant 0 : i32
    %c0_i32_0 = arith.constant 0 : i32
    %c0_i32_1 = arith.constant 0 : i32
    return %c0_i32, %c0_i32_0 : i32, i32
  }
  func.func @transform_2(%arg0: i32) -> (i32, i32) {
    %c0_i32 = arith.constant 0 : i32
    %c0_i32_0 = arith.constant 0 : i32
    %c0_i32_1 = arith.constant 0 : i32
    return %c0_i32, %c0_i32_0 : i32, i32
  }
  func.func @transform_3(%arg0: i32) -> (i32, i32) {
    %c0_i32 = arith.constant 0 : i32
    %c0_i32_0 = arith.constant 0 : i32
    return %arg0, %c0_i32 : i32, i32
  }
}

</mosaic_0001>

<llo_original>
// kernel: tpu_custom_call.1
$region0: #{tpu_custom_call.1}
  #allocation0 [shape = 'u32[]', space=smem, size = 0x4, offset = 0x4, fixed_abs, tag = 'smem constant byte address 0x4 - core index']
  #allocation1 [shape = 'u32[72,128]{1,0:T(1,128)}', space=vmem, size = 0x9000, scoped, tag = 'internal scratch']
  %s0 = inlined_call_operand.hbm [shape: f32[16,32], index: 0, kind: input, shape index: {}]
  %s1 = inlined_call_operand.hbm [shape: f32[32,96], index: 1, kind: input, shape index: {}]
  %s2 = inlined_call_operand.vmem [shape: f32[1,96], index: 2, kind: input, shape index: {}]
  %s3 = inlined_call_operand.hbm [shape: f32[16,96], index: 3, kind: output, shape index: {}]
  %s4 = sld [smem:[#allocation0]]
  $region30: #{tpu_custom_call.1} parent=0
    _
  %s6 = ssub.s32 1, %s4
  %s7 = scalar_select 0, %s6, %s4
  $region1: #{tpu_custom_call.1} parent=0
    #allocation2 [shape = 'u8[8192]{0}', space=vmem, size = 0x2000, scoped, tag = 'input window, operand 0, single buffered']
    #allocation3 [shape = 's32[1]{0}', space=sflag, size = 0x4, scoped, tag = 'scoped memory for tpu_custom_call.1']
    #allocation4 [shape = 's32[1]{0}', space=sflag, size = 0x4, scoped, tag = 'scoped memory for tpu_custom_call.1']
    #allocation5 [shape = 'u8[16384]{0}', space=vmem, size = 0x4000, scoped, tag = 'input window, operand 1, single buffered']
    #allocation6 [shape = 's32[1]{0}', space=sflag, size = 0x4, scoped, tag = 'scoped memory for tpu_custom_call.1']
    #allocation7 [shape = 'u8[8192]{0}', space=vmem, size = 0x2000, scoped, tag = 'output window, operand 0, single buffered']
    %8 = vsyncpa [#allocation3], 0
    %9 = vsyncpa [#allocation6], 0
    %10 = vsyncpa [#allocation4], 0
    // Predicated region
    $region2: #{tpu_custom_call.1} parent=1 // pred_check
      _
    $region3: #{tpu_custom_call.1} parent=1 // pred_check_branch
      %12 = sbr.rel (0) target = $region5
    $region4: #{tpu_custom_call.1} parent=1 // pred_region
      %14 = vsyncadd [#allocation3], 0
      %s15 = sshll.u32 %s0, 4
      %s16 = int_to_ptr.hbm [resolvable:$true] %s15
      %s17 = sshll.u32 [#allocation2], 4
      %s18 = int_to_ptr.vmem [resolvable:$true] %s17
      %23 = dma.hbm_to_vmem [thread:$0]  %s16, 256, %s18, [#allocation3], 128, 128, 8
    $region5: #{tpu_custom_call.1} parent=1 // pred_fallthru
      _
    // Predicated region
    $region6: #{tpu_custom_call.1} parent=1 // pred_check
      _
    $region7: #{tpu_custom_call.1} parent=1 // pred_check_branch
      %25 = sbr.rel (0) target = $region9
    $region8: #{tpu_custom_call.1} parent=1 // pred_region
      %27 = vsyncadd [#allocation6], 0
      %s28 = sshll.u32 %s1, 4
      %s29 = int_to_ptr.hbm [resolvable:$true] %s28
      %s30 = sshll.u32 [#allocation5], 4
      %s31 = int_to_ptr.vmem [resolvable:$true] %s30
      %36 = dma.hbm_to_vmem [thread:$0]  %s29, 512, %s31, [#allocation6], 128, 128, 8
    $region9: #{tpu_custom_call.1} parent=1 // pred_fallthru
      _
    // Predicated region
    $region10: #{tpu_custom_call.1} parent=1 // pred_check
      _
    $region11: #{tpu_custom_call.1} parent=1 // pred_check_branch
      %38 = sbr.rel (0) target = $region13
    $region12: #{tpu_custom_call.1} parent=1 // pred_region
      _
    $region13: #{tpu_custom_call.1} parent=1 // pred_fallthru
      _
    // Predicated region
    $region14: #{tpu_custom_call.1} parent=1 // pred_check
      _
    $region15: #{tpu_custom_call.1} parent=1 // pred_check_branch
      %40 = sbr.rel (0) target = $region17
    $region16: #{tpu_custom_call.1} parent=1 // pred_region
      %42 = dma.done [#allocation3], 256
    $region17: #{tpu_custom_call.1} parent=1 // pred_fallthru
      _
    // Predicated region
    $region18: #{tpu_custom_call.1} parent=1 // pred_check
      _
    $region19: #{tpu_custom_call.1} parent=1 // pred_check_branch
      %44 = sbr.rel (0) target = $region21
    $region20: #{tpu_custom_call.1} parent=1 // pred_region
      %46 = dma.done [#allocation6], 512
    $region21: #{tpu_custom_call.1} parent=1 // pred_fallthru
      _
    %v47 = vld [vmem:[#allocation2] sm:$0xff]
    %v48 = vld [vmem:[#allocation2 + $0x8] sm:$0xff]
    %v49 = vld [vmem:[#allocation5] sm:$0xff]
    %v50 = vld [vmem:[#allocation5 + $0x8] sm:$0xff]
    %v51 = vld [vmem:[#allocation5 + $0x10] sm:$0xff]
    %v52 = vld [vmem:[#allocation5 + $0x18] sm:$0xff]
    %v53 = vld [vmem:[%s2] sm:$0x1]
    %v55 = vperm.slane %v53, 0
    %vm57 = vcmask 261120
    %v59 = vsel %vm57, %v47, 0
    %v62 = vsel %vm57, %v48, 0
    %64 = vmatpush.msra.mxu0 0.0
    %65 = vmatpush.msra.mxu0 0.0
    %66 = vmatpush.msra.mxu0 0.0
    %67 = vmatpush.msra.mxu0 0.0
    %68 = vmatpush.msra.mxu0 0.0
    %69 = vmatpush.msra.mxu0 0.0
    %70 = vmatpush.msra.mxu0 0.0
    %71 = vmatpush.msra.mxu0 0.0
    %72 = vmatpush.msra.mxu0 0.0
    %73 = vmatpush.msra.mxu0 0.0
    %74 = vmatpush.msra.mxu0 0.0
    %75 = vmatpush.msra.mxu0 0.0
    %76 = vmatpush.msra.mxu0 %v52
    %77 = vmatpush.msra.mxu0 %v51
    %78 = vmatpush.msra.mxu0 %v50
    %79 = vmatpush.msra.mxu0 %v49
    %80 = vmatmul.f32.gmra.mxu0 %v59
    %v81 = vpop.f32.mrf.mxu0
    %v82 = vadd.f32 %v55, %v81
    %83 = vmatmul.f32.gmra.mxu0 %v62
    %v84 = vpop.f32.mrf.mxu0
    %v85 = vadd.f32 %v55, %v84
    %86 = vdwg.mxu0
    %vm87 = vcmask 785408
    %88 = vst.msk [vmem:[#allocation7] sm:$0xff] %vm87, %v82
    %89 = vst.msk [vmem:[#allocation7 + $0x8] sm:$0xff] %vm87, %v85
    // Predicated region
    $region22: #{tpu_custom_call.1} parent=1 // pred_check
      _
    $region23: #{tpu_custom_call.1} parent=1 // pred_check_branch
      %91 = sbr.rel (0) target = $region25
    $region24: #{tpu_custom_call.1} parent=1 // pred_region
      %93 = vsyncadd [#allocation4], 0
      %s94 = sshll.u32 [#allocation7], 4
      %s95 = int_to_ptr.vmem [resolvable:$true] %s94
      %s96 = sshll.u32 %s3, 4
      %s97 = int_to_ptr.hbm [resolvable:$true] %s96
      %102 = dma.vmem_to_hbm [thread:$0]  %s95, 256, %s97, [#allocation4], 128, 128, 8
    $region25: #{tpu_custom_call.1} parent=1 // pred_fallthru
      _
    // Predicated region
    $region26: #{tpu_custom_call.1} parent=1 // pred_check
      _
    $region27: #{tpu_custom_call.1} parent=1 // pred_check_branch
      %104 = sbr.rel (0) target = $region29
    $region28: #{tpu_custom_call.1} parent=1 // pred_region
      %106 = dma.done [#allocation4], 256
    $region29: #{tpu_custom_call.1} parent=1 // pred_fallthru
      _
    %107 = vsyncpa [#allocation3], 1
    %108 = vsyncpa [#allocation6], 1
    %109 = vsyncpa [#allocation4], 1

</llo_original>
